<compile_context>
chip_gen: v7x
topology: tpu7x:2x2x1
jax: 0.10.0
libtpu: 0.0.40
codegen_flags: <defaults>
</compile_context>

<pallas_src>
import functools

import jax
import jax.numpy as jnp
from jax.experimental import pallas as pl
from jax.experimental.pallas import tpu as pltpu


def _round_up(x, m):
    return ((x + m - 1) // m) * m


def _sublane_granule(*dtypes):
    """Min legal second-to-last block dim: 8 for 4B, 16 for 2B, 32 for 1B."""
    g = 8
    for dt in dtypes:
        g = max(g, 32 // jnp.dtype(dt).itemsize)
    return g


def _choose_batch_tile(B, granule, block_b):
    """Pick (TB, B_p).

    Prefers no batch padding (a block dim equal to the full array dim is always
    legal). For granule-aligned batches aims for >= 4 grid steps (>= 2 per v7x
    TensorCore so input DMAs overlap with compute) without exceeding block_b,
    and keeps TB a divisor of B_p so no padded rows are ever created.
    """
    if B % granule != 0:
        if B <= block_b:
            return B, B                      # single full-batch block, no padding
        B_p = _round_up(B, granule)          # large unaligned batch: pad rows
    else:
        B_p = B
    tb = min(block_b, max(granule, _round_up(-(-B_p // 4), granule)))
    while B_p % tb:                          # keep TB a divisor of B_p
        tb -= granule
    return tb, B_p


def _cross_modal_memory_kernel(v_ref, t_ref, wv_ref, wt_ref, b_ref, mem_ref,
                               o_ref, *, approx_recip):
    cdt = wv_ref.dtype
    # logits = [v | t] @ W_cat + b, expressed as two MXU dots on the split
    # weight (removes the wrapper-side concat); f32 accumulation.
    logits = (
        jnp.dot(v_ref[...].astype(cdt), wv_ref[...],
                preferred_element_type=jnp.float32)
        + jnp.dot(t_ref[...].astype(cdt), wt_ref[...],
                  preferred_element_type=jnp.float32)
        + b_ref[...]
    )
    # Softmax over the (lane-axis) memory dimension, all math in f32.
    m = jnp.max(logits, axis=-1, keepdims=True)
    e = jnp.exp(logits - m)
    denom = jnp.sum(e, axis=-1, keepdims=True)
    if approx_recip:
        scores = e * pl.reciprocal(denom, approx=True)   # EUP vrcp (production)
    else:
        scores = e / denom                               # exact (validation)
    # relevant_memory = scores @ memory
    o_ref[...] = jnp.dot(scores.astype(mem_ref.dtype), mem_ref[...],
                         preferred_element_type=jnp.float32).astype(o_ref.dtype)


def prepare_params(W_m, b_m, memory, compute_dtype=jnp.bfloat16):
    """One-time (outside the hot path) conversion of PyTorch-layout params.

    W_m: [M, 2D] (nn.Linear weight), b_m: [M], memory: [M, D].
    Returns MXU-canonical, M-lane-padded params:
      W_v, W_t : [D, M_p]  (Linear weight, transposed and split over the concat)
      bias     : [1, M_p]  f32 (MUST stay f32; padded slots pinned to -1e30)
      mem      : [M_p, D]  padded rows are zeros.
    """
    M, twoD = W_m.shape
    D = twoD // 2
    assert memory.shape == (M, D)
    M_p = _round_up(M, 128)

    W_cat = W_m.T.astype(compute_dtype)                           # [2D, M]
    W_v = jnp.zeros((D, M_p), compute_dtype).at[:, :M].set(W_cat[:D])
    W_t = jnp.zeros((D, M_p), compute_dtype).at[:, :M].set(W_cat[D:])
    bias = jnp.full((1, M_p), -1e30, jnp.float32)                  # pad slots ~0 weight
    bias = bias.at[:, :M].set(b_m.astype(jnp.float32)[None, :])
    mem = jnp.zeros((M_p, D), compute_dtype).at[:M, :].set(
        memory.astype(compute_dtype))
    return W_v, W_t, bias, mem


def cross_modal_memory_forward(visual_feat, text_feat, W_v, W_t, bias, mem,
                               *, block_b=256, out_dtype=None,
                               approx_recip=False):
    """visual_feat, text_feat: [B, D]; params from prepare_params(). -> [B, D]."""
    B, D = visual_feat.shape
    assert text_feat.shape == (B, D)
    M_p = W_v.shape[1]
    assert W_v.shape == W_t.shape == (D, M_p)
    assert bias.shape == (1, M_p) and bias.dtype == jnp.float32   # -1e30 needs f32
    assert mem.shape[0] == M_p
    D_out = mem.shape[1]
    out_dtype = out_dtype or visual_feat.dtype
    compute_dtype = W_v.dtype

    granule = _sublane_granule(visual_feat.dtype, text_feat.dtype, out_dtype)
    TB, B_p = _choose_batch_tile(B, granule, block_b)
    if B_p != B:
        pad = ((0, B_p - B), (0, 0))
        visual_feat = jnp.pad(visual_feat, pad)
        text_feat = jnp.pad(text_feat, pad)

    isz = lambda dt: jnp.dtype(dt).itemsize
    # Footprint estimate assuming everything double-buffered, +2x headroom.
    act_bytes = 2 * TB * D * isz(visual_feat.dtype) + TB * D_out * isz(out_dtype)
    resident_bytes = (2 * D * M_p + M_p * D_out) * isz(compute_dtype) + M_p * 4
    vmem_limit = int(min(max(4 * (act_bytes + resident_bytes), 32 << 20), 64 << 20))

    cost = pl.CostEstimate(
        flops=2 * B_p * M_p * (2 * D + D_out),
        transcendentals=B_p * M_p,
        bytes_accessed=B_p * (2 * D * isz(visual_feat.dtype)
                              + D_out * isz(out_dtype)) + resident_bytes,
    )

    kernel = functools.partial(_cross_modal_memory_kernel,
                               approx_recip=approx_recip)

    out = pl.pallas_call(
        kernel,
        out_shape=jax.ShapeDtypeStruct((B_p, D_out), out_dtype),
        grid_spec=pltpu.PrefetchScalarGridSpec(
            num_scalar_prefetch=0,
            grid=(B_p // TB,),
            in_specs=[
                pl.BlockSpec((TB, D), lambda i: (i, 0)),       # visual: batch-tiled
                pl.BlockSpec((TB, D), lambda i: (i, 0)),       # text:   batch-tiled
                pl.BlockSpec((D, M_p), lambda i: (0, 0)),      # W_v: VMEM-resident
                pl.BlockSpec((D, M_p), lambda i: (0, 0)),      # W_t: VMEM-resident
                pl.BlockSpec((1, M_p), lambda i: (0, 0)),      # bias: VMEM-resident
                pl.BlockSpec((M_p, D_out), lambda i: (0, 0)),  # memory bank: resident
            ],
            out_specs=pl.BlockSpec((TB, D_out), lambda i: (i, 0)),
        ),
        compiler_params=pltpu.CompilerParams(
            dimension_semantics=("parallel",),
            vmem_limit_bytes=vmem_limit,
        ),
        cost_estimate=cost,
    )(visual_feat, text_feat, W_v, W_t, bias, mem)

    # TODO(synk): if memory_size grows large enough that the resident bank (plus
    # its pipeline buffer) approaches the scoped-VMEM budget (cut over at ~half
    # the M on v7x's 64 MiB), switch to a streamed online-softmax over an M grid
    # axis, or single-buffer the resident operands via pipeline_mode.
    return out if B_p == B else out[:B]


def _reference_forward(visual_feat, text_feat, W_m, b_m, memory,
                       precision=None):
    x_vt = jnp.concatenate([visual_feat, text_feat], axis=-1)
    logits = jnp.dot(x_vt, W_m.T, precision=precision) + b_m
    scores = jax.nn.softmax(logits, axis=-1)
    return jnp.dot(scores, memory, precision=precision)


if __name__ == "__main__":
    HIGH = jax.lax.Precision.HIGHEST

    def make_case(key, B, D, M, w_scale=0.05):
        k1, k2, k3, k4, k5 = jax.random.split(key, 5)
        vis = jax.random.normal(k1, (B, D), jnp.float32)
        txt = jax.random.normal(k2, (B, D), jnp.float32)
        bank = jax.random.normal(k3, (M, D), jnp.float32)            # nn.Parameter(randn(M, D))
        W = jax.random.normal(k4, (M, 2 * D), jnp.float32) * w_scale  # nn.Linear(2D, M).weight
        b = jax.random.normal(k5, (M,), jnp.float32) * w_scale        # nn.Linear(2D, M).bias
        return vis, txt, W, b, bank

    key = jax.random.PRNGKey(0)
    k_small, k_big = jax.random.split(key)

    # --- Case 1: tiny, unaligned shapes (full-batch block, M padded 40->128),
    #     f32 params, exact reciprocal. ---
    vis, txt, W, b, bank = make_case(k_small, B=4, D=64, M=40)
    ref = _reference_forward(vis, txt, W, b, bank, precision=HIGH)
    Wv, Wt, bias, mem = prepare_params(W, b, bank, compute_dtype=jnp.float32)
    out = jax.block_until_ready(
        cross_modal_memory_forward(vis, txt, Wv, Wt, bias, mem))
    assert out.shape == (4, 64)
    assert jnp.allclose(out, ref, atol=1e-2, rtol=1e-2), "case1 f32 mismatch"

    # --- Case 2: lane-aligned shapes, batch-tiled grid (B=256 -> 4 steps of 64). ---
    vis, txt, W, b, bank = make_case(k_big, B=256, D=128, M=200)
    ref = _reference_forward(vis, txt, W, b, bank, precision=HIGH)

    # f32 validation path (exact reciprocal).
    Wv, Wt, bias, mem = prepare_params(W, b, bank, compute_dtype=jnp.float32)
    out = jax.block_until_ready(
        cross_modal_memory_forward(vis, txt, Wv, Wt, bias, mem))
    assert out.shape == (256, 128)
    assert jnp.allclose(out, ref, atol=1e-2, rtol=1e-2), "case2 f32 mismatch"

    # Production path: bf16 operands / f32 accumulation + approx reciprocal.
    Wv16, Wt16, bias16, mem16 = prepare_params(W, b, bank)  # bf16 default
    out16 = jax.block_until_ready(
        cross_modal_memory_forward(vis, txt, Wv16, Wt16, bias16, mem16,
                                   approx_recip=True))
    assert out16.shape == (256, 128)
    assert jnp.allclose(out16, ref, atol=5e-2, rtol=5e-2), "case2 bf16 mismatch"

    print("KERNEL_OK")
</pallas_src>

<mosaic_0001>
module attributes {stable_mosaic.version = 11 : i64} {
  func.func @_cross_modal_memory_kernel(%arg0: i32, %arg1: memref<4x64xf32, #tpu.memory_space<vmem>>, %arg2: memref<4x64xf32, #tpu.memory_space<vmem>>, %arg3: memref<64x128xf32, #tpu.memory_space<vmem>>, %arg4: memref<64x128xf32, #tpu.memory_space<vmem>>, %arg5: memref<1x128xf32, #tpu.memory_space<vmem>>, %arg6: memref<128x64xf32, #tpu.memory_space<vmem>>, %arg7: memref<4x64xf32, #tpu.memory_space<vmem>>) attributes {dimension_semantics = [#tpu.dimension_semantics<parallel>], iteration_bounds = array<i64: 1>, scalar_prefetch = 0 : i64, scratch_operands = 0 : i64, tpu.core_type = #tpu.core_type<tc>, window_params = [{transform_indices = @transform_0, window_bounds = array<i64: 4, 64>}, {transform_indices = @transform_1, window_bounds = array<i64: 4, 64>}, {pipeline_mode = #tpu.pipeline_mode<synchronous>, transform_indices = @transform_2, window_bounds = array<i64: 64, 128>}, {pipeline_mode = #tpu.pipeline_mode<synchronous>, transform_indices = @transform_3, window_bounds = array<i64: 64, 128>}, {pipeline_mode = #tpu.pipeline_mode<synchronous>, transform_indices = @transform_4, window_bounds = array<i64: 1, 128>}, {pipeline_mode = #tpu.pipeline_mode<synchronous>, transform_indices = @transform_5, window_bounds = array<i64: 128, 64>}, {transform_indices = @transform_6, window_bounds = array<i64: 4, 64>}]} {
    %c0 = arith.constant 0 : index
    %c0_0 = arith.constant 0 : index
    %0 = vector.load %arg1[%c0, %c0_0] : memref<4x64xf32, #tpu.memory_space<vmem>>, vector<4x64xf32>
    %c0_1 = arith.constant 0 : index
    %c0_2 = arith.constant 0 : index
    %1 = vector.load %arg3[%c0_1, %c0_2] : memref<64x128xf32, #tpu.memory_space<vmem>>, vector<64x128xf32>
    %cst = arith.constant dense<0.000000e+00> : vector<4x128xf32>
    %2 = tpu.matmul %0, %1, %cst {dimension_numbers = #tpu.dot_dimension_numbers<[1], [0], [0], [1], [0, 0, 1, 1], [], []>} : vector<4x64xf32>, vector<64x128xf32>, vector<4x128xf32> -> vector<4x128xf32>
    %c0_3 = arith.constant 0 : index
    %c0_4 = arith.constant 0 : index
    %3 = vector.load %arg2[%c0_3, %c0_4] : memref<4x64xf32, #tpu.memory_space<vmem>>, vector<4x64xf32>
    %c0_5 = arith.constant 0 : index
    %c0_6 = arith.constant 0 : index
    %4 = vector.load %arg4[%c0_5, %c0_6] : memref<64x128xf32, #tpu.memory_space<vmem>>, vector<64x128xf32>
    %cst_7 = arith.constant dense<0.000000e+00> : vector<4x128xf32>
    %5 = tpu.matmul %3, %4, %cst_7 {dimension_numbers = #tpu.dot_dimension_numbers<[1], [0], [0], [1], [0, 0, 1, 1], [], []>} : vector<4x64xf32>, vector<64x128xf32>, vector<4x128xf32> -> vector<4x128xf32>
    %6 = arith.addf %2, %5 : vector<4x128xf32>
    %c0_8 = arith.constant 0 : index
    %c0_9 = arith.constant 0 : index
    %7 = vector.load %arg5[%c0_8, %c0_9] : memref<1x128xf32, #tpu.memory_space<vmem>>, vector<1x128xf32>
    %8 = vector.broadcast %7 : vector<1x128xf32> to vector<4x128xf32>
    %9 = arith.addf %6, %8 : vector<4x128xf32>
    %cst_10 = arith.constant dense<0xFF800000> : vector<4xf32>
    %10 = vector.multi_reduction <maximumf>, %9, %cst_10 [1] : vector<4x128xf32> to vector<4xf32>
    %11 = vector.shape_cast %10 : vector<4xf32> to vector<4x1xf32>
    %12 = vector.broadcast %11 : vector<4x1xf32> to vector<4x128xf32>
    %13 = arith.subf %9, %12 : vector<4x128xf32>
    %14 = math.exp %13 : vector<4x128xf32>
    %cst_11 = arith.constant dense<0.000000e+00> : vector<4xf32>
    %15 = vector.multi_reduction <add>, %14, %cst_11 [1] : vector<4x128xf32> to vector<4xf32>
    %16 = vector.shape_cast %15 : vector<4xf32> to vector<4x1xf32>
    %17 = vector.broadcast %16 : vector<4x1xf32> to vector<4x128xf32>
    %18 = arith.divf %14, %17 : vector<4x128xf32>
    %c0_12 = arith.constant 0 : index
    %c0_13 = arith.constant 0 : index
    %19 = vector.load %arg6[%c0_12, %c0_13] : memref<128x64xf32, #tpu.memory_space<vmem>>, vector<128x64xf32>
    %cst_14 = arith.constant dense<0.000000e+00> : vector<4x64xf32>
    %20 = tpu.matmul %18, %19, %cst_14 {dimension_numbers = #tpu.dot_dimension_numbers<[1], [0], [0], [1], [0, 0, 1, 1], [], []>} : vector<4x128xf32>, vector<128x64xf32>, vector<4x64xf32> -> vector<4x64xf32>
    %c0_15 = arith.constant 0 : index
    %c0_16 = arith.constant 0 : index
    %21 = vector.load %arg7[%c0_15, %c0_16] : memref<4x64xf32, #tpu.memory_space<vmem>>, vector<4x64xf32>
    tpu.vector_store %arg7[%c0_15, %c0_16], %20 {strides = array<i32>} : memref<4x64xf32, #tpu.memory_space<vmem>>, vector<4x64xf32>,
    return
  }
  func.func @transform_0(%arg0: i32) -> (i32, i32) {
    %c0_i32 = arith.constant 0 : i32
    %c0_i32_0 = arith.constant 0 : i32
    return %arg0, %c0_i32 : i32, i32
  }
  func.func @transform_1(%arg0: i32) -> (i32, i32) {
    %c0_i32 = arith.constant 0 : i32
    %c0_i32_0 = arith.constant 0 : i32
    return %arg0, %c0_i32 : i32, i32
  }
  func.func @transform_2(%arg0: i32) -> (i32, i32) {
    %c0_i32 = arith.constant 0 : i32
    %c0_i32_0 = arith.constant 0 : i32
    %c0_i32_1 = arith.constant 0 : i32
    return %c0_i32, %c0_i32_0 : i32, i32
  }
  func.func @transform_3(%arg0: i32) -> (i32, i32) {
    %c0_i32 = arith.constant 0 : i32
    %c0_i32_0 = arith.constant 0 : i32
    %c0_i32_1 = arith.constant 0 : i32
    return %c0_i32, %c0_i32_0 : i32, i32
  }
  func.func @transform_4(%arg0: i32) -> (i32, i32) {
    %c0_i32 = arith.constant 0 : i32
    %c0_i32_0 = arith.constant 0 : i32
    %c0_i32_1 = arith.constant 0 : i32
    return %c0_i32, %c0_i32_0 : i32, i32
  }
  func.func @transform_5(%arg0: i32) -> (i32, i32) {
    %c0_i32 = arith.constant 0 : i32
    %c0_i32_0 = arith.constant 0 : i32
    %c0_i32_1 = arith.constant 0 : i32
    return %c0_i32, %c0_i32_0 : i32, i32
  }
  func.func @transform_6(%arg0: i32) -> (i32, i32) {
    %c0_i32 = arith.constant 0 : i32
    %c0_i32_0 = arith.constant 0 : i32
    return %arg0, %c0_i32 : i32, i32
  }
}

</mosaic_0001>

<llo_original>
// kernel: tpu_custom_call.1
$region0: #{tpu_custom_call.1}
  #allocation0 [shape = 'u32[]', space=smem, size = 0x4, offset = 0x4, fixed_abs, tag = 'smem constant byte address 0x4 - core index']
  #allocation1 [shape = 'u32[144,128]{1,0:T(1,128)}', space=vmem, size = 0x12000, scoped, tag = 'internal scratch']
  %s0 = inlined_call_operand.vmem [shape: f32[4,64], index: 0, kind: input, shape index: {}]
  %s1 = inlined_call_operand.vmem [shape: f32[4,64], index: 1, kind: input, shape index: {}]
  %s2 = inlined_call_operand.vmem [shape: f32[64,128], index: 2, kind: input, shape index: {}]
  %s3 = inlined_call_operand.vmem [shape: f32[64,128], index: 3, kind: input, shape index: {}]
  %s4 = inlined_call_operand.vmem [shape: f32[1,128], index: 4, kind: input, shape index: {}]
  %s5 = inlined_call_operand.vmem [shape: f32[128,64], index: 5, kind: input, shape index: {}]
  %s6 = inlined_call_operand.hbm [shape: f32[4,64], index: 6, kind: output, shape index: {}]
  %s7 = sld [smem:[#allocation0]]
  $region34: #{tpu_custom_call.1} parent=0
    _
  %s9 = ssub.s32 1, %s7
  %s10 = scalar_select 0, %s9, %s7
  $region1: #{tpu_custom_call.1} parent=0
    #allocation2 [shape = 'u8[2048]{0}', space=vmem, size = 0x800, scoped, tag = 'output window, operand 0, single buffered']
    #allocation3 [shape = 's32[1]{0}', space=sflag, size = 0x4, scoped, tag = 'scoped memory for tpu_custom_call.1']
    %11 = vsyncpa [#allocation3], 0
    // Predicated region
    $region2: #{tpu_custom_call.1} parent=1 // pred_check
      _
    $region3: #{tpu_custom_call.1} parent=1 // pred_check_branch
      %13 = sbr.rel (0) target = $region5
    $region4: #{tpu_custom_call.1} parent=1 // pred_region
      _
    $region5: #{tpu_custom_call.1} parent=1 // pred_fallthru
      _
    // Predicated region
    $region6: #{tpu_custom_call.1} parent=1 // pred_check
      _
    $region7: #{tpu_custom_call.1} parent=1 // pred_check_branch
      %15 = sbr.rel (0) target = $region9
    $region8: #{tpu_custom_call.1} parent=1 // pred_region
      _
    $region9: #{tpu_custom_call.1} parent=1 // pred_fallthru
      _
    // Predicated region
    $region10: #{tpu_custom_call.1} parent=1 // pred_check
      _
    $region11: #{tpu_custom_call.1} parent=1 // pred_check_branch
      %17 = sbr.rel (0) target = $region13
    $region12: #{tpu_custom_call.1} parent=1 // pred_region
      _
    $region13: #{tpu_custom_call.1} parent=1 // pred_fallthru
      _
    // Predicated region
    $region14: #{tpu_custom_call.1} parent=1 // pred_check
      _
    $region15: #{tpu_custom_call.1} parent=1 // pred_check_branch
      %19 = sbr.rel (0) target = $region17
    $region16: #{tpu_custom_call.1} parent=1 // pred_region
      _
    $region17: #{tpu_custom_call.1} parent=1 // pred_fallthru
      _
    // Predicated region
    $region18: #{tpu_custom_call.1} parent=1 // pred_check
      _
    $region19: #{tpu_custom_call.1} parent=1 // pred_check_branch
      %21 = sbr.rel (0) target = $region21
    $region20: #{tpu_custom_call.1} parent=1 // pred_region
      _
    $region21: #{tpu_custom_call.1} parent=1 // pred_fallthru
      _
    // Predicated region
    $region22: #{tpu_custom_call.1} parent=1 // pred_check
      _
    $region23: #{tpu_custom_call.1} parent=1 // pred_check_branch
      %23 = sbr.rel (0) target = $region25
    $region24: #{tpu_custom_call.1} parent=1 // pred_region
      _
    $region25: #{tpu_custom_call.1} parent=1 // pred_fallthru
      _
    %v24 = vld [vmem:[%s0] sm:$0xf]
    %v25 = vld [vmem:[%s2] sm:$0xff]
    %v26 = vld [vmem:[%s2 + $0x8] sm:$0xff]
    %v27 = vld [vmem:[%s2 + $0x10] sm:$0xff]
    %v28 = vld [vmem:[%s2 + $0x18] sm:$0xff]
    %v29 = vld [vmem:[%s2 + $0x20] sm:$0xff]
    %v30 = vld [vmem:[%s2 + $0x28] sm:$0xff]
    %v31 = vld [vmem:[%s2 + $0x30] sm:$0xff]
    %v32 = vld [vmem:[%s2 + $0x38] sm:$0xff]
    %v33 = vld [vmem:[%s1] sm:$0xf]
    %v34 = vld [vmem:[%s3] sm:$0xff]
    %v35 = vld [vmem:[%s3 + $0x8] sm:$0xff]
    %v36 = vld [vmem:[%s3 + $0x10] sm:$0xff]
    %v37 = vld [vmem:[%s3 + $0x18] sm:$0xff]
    %v38 = vld [vmem:[%s3 + $0x20] sm:$0xff]
    %v39 = vld [vmem:[%s3 + $0x28] sm:$0xff]
    %v40 = vld [vmem:[%s3 + $0x30] sm:$0xff]
    %v41 = vld [vmem:[%s3 + $0x38] sm:$0xff]
    %vm42 = vcmask 523264
    %v44 = vsel %vm42, %v33, 0
    %46 = vmatprep.subr.mxu0 0.0
    %47 = vmatpush1.msra.mxu0 %v34
    %48 = vmatprep.subr.mxu0 0.0
    %49 = vmatpush1.msra.mxu0 %v35
    %50 = vmatprep.subr.mxu0 0.0
    %51 = vmatpush1.msra.mxu0 %v36
    %52 = vmatprep.subr.mxu0 0.0
    %53 = vmatpush1.msra.mxu0 %v37
    %54 = vmatprep.subr.mxu0 0.0
    %55 = vmatpush1.msra.mxu0 %v38
    %56 = vmatprep.subr.mxu0 0.0
    %57 = vmatpush1.msra.mxu0 %v39
    %58 = vmatprep.subr.mxu0 0.0
    %59 = vmatpush1.msra.mxu0 %v40
    %60 = vmatprep.subr.mxu0 0.0
    %61 = vmatpush1.msra.mxu0 %v41
    %62 = vmatprep.subr.mxu0 0.0
    %63 = vmatpush1.msra.mxu0 0.0
    %64 = vmatprep.subr.mxu0 0.0
    %65 = vmatpush1.msra.mxu0 0.0
    %66 = vmatprep.subr.mxu0 0.0
    %67 = vmatpush1.msra.mxu0 0.0
    %68 = vmatprep.subr.mxu0 0.0
    %69 = vmatpush1.msra.mxu0 0.0
    %70 = vmatprep.subr.mxu0 0.0
    %71 = vmatpush1.msra.mxu0 0.0
    %72 = vmatprep.subr.mxu0 0.0
    %73 = vmatpush1.msra.mxu0 0.0
    %74 = vmatprep.subr.mxu0 0.0
    %75 = vmatpush1.msra.mxu0 0.0
    %76 = vmatprep.subr.mxu0 0.0
    %77 = vmatpush1.msra.mxu0 0.0
    %78 = vmatprep.subr.mxu0 0.0
    %79 = vmatpush1.msra.mxu0 0.0
    %80 = vmatprep.subr.mxu0 0.0
    %81 = vmatpush1.msra.mxu0 0.0
    %82 = vmatprep.subr.mxu0 0.0
    %83 = vmatpush1.msra.mxu0 0.0
    %84 = vmatprep.subr.mxu0 0.0
    %85 = vmatpush1.msra.mxu0 0.0
    %86 = vmatprep.subr.mxu0 0.0
    %87 = vmatpush1.msra.mxu0 0.0
    %88 = vmatprep.subr.mxu0 0.0
    %89 = vmatpush1.msra.mxu0 0.0
    %90 = vmatprep.subr.mxu0 0.0
    %91 = vmatpush1.msra.mxu0 0.0
    %92 = vmatprep.subr.mxu0 0.0
    %93 = vmatpush1.msra.mxu0 0.0
    %94 = vmatprep.subr.mxu0 0.0
    %95 = vmatpush1.msra.mxu0 0.0
    %96 = vmatprep.subr.mxu0 0.0
    %97 = vmatpush1.msra.mxu0 0.0
    %98 = vmatprep.subr.mxu0 0.0
    %99 = vmatpush1.msra.mxu0 0.0
    %100 = vmatprep.subr.mxu0 0.0
    %101 = vmatpush1.msra.mxu0 0.0
    %102 = vmatprep.subr.mxu0 0.0
    %103 = vmatpush1.msra.mxu0 0.0
    %104 = vmatprep.subr.mxu0 0.0
    %105 = vmatpush1.msra.mxu0 0.0
    %106 = vmatprep.subr.mxu0 0.0
    %107 = vmatpush1.msra.mxu0 0.0
    %108 = vmatprep.subr.mxu0 0.0
    %109 = vmatpush1.msra.mxu0 0.0
    %110 = vmatprep.mubr.f32.mxu0 0.0
    %111 = vmatmul.mubr.f32.gmra.mrb[0].mxu0 %v44
    %v112 = vpop.f32.mrb[0].mxu0
    %v113 = vadd.f32 0.0, %v112
    %v114 = vpop.f32.mrb[0].mxu0
    %115 = vdwg.mxu0
    %v117 = vsel %vm42, %v24, 0
    %119 = vmatprep.subr.mxu0 0.0
    %120 = vmatpush1.msra.mxu0 %v25
    %121 = vmatprep.subr.mxu0 0.0
    %122 = vmatpush1.msra.mxu0 %v26
    %123 = vmatprep.subr.mxu0 0.0
    %124 = vmatpush1.msra.mxu0 %v27
    %125 = vmatprep.subr.mxu0 0.0
    %126 = vmatpush1.msra.mxu0 %v28
    %127 = vmatprep.subr.mxu0 0.0
    %128 = vmatpush1.msra.mxu0 %v29
    %129 = vmatprep.subr.mxu0 0.0
    %130 = vmatpush1.msra.mxu0 %v30
    %131 = vmatprep.subr.mxu0 0.0
    %132 = vmatpush1.msra.mxu0 %v31
    %133 = vmatprep.subr.mxu0 0.0
    %134 = vmatpush1.msra.mxu0 %v32
    %135 = vmatprep.subr.mxu0 0.0
    %136 = vmatpush1.msra.mxu0 0.0
    %137 = vmatprep.subr.mxu0 0.0
    %138 = vmatpush1.msra.mxu0 0.0
    %139 = vmatprep.subr.mxu0 0.0
    %140 = vmatpush1.msra.mxu0 0.0
    %141 = vmatprep.subr.mxu0 0.0
    %142 = vmatpush1.msra.mxu0 0.0
    %143 = vmatprep.subr.mxu0 0.0
    %144 = vmatpush1.msra.mxu0 0.0
    %145 = vmatprep.subr.mxu0 0.0
    %146 = vmatpush1.msra.mxu0 0.0
    %147 = vmatprep.subr.mxu0 0.0
    %148 = vmatpush1.msra.mxu0 0.0
    %149 = vmatprep.subr.mxu0 0.0
    %150 = vmatpush1.msra.mxu0 0.0
    %151 = vmatprep.subr.mxu0 0.0
    %152 = vmatpush1.msra.mxu0 0.0
    %153 = vmatprep.subr.mxu0 0.0
    %154 = vmatpush1.msra.mxu0 0.0
    %155 = vmatprep.subr.mxu0 0.0
    %156 = vmatpush1.msra.mxu0 0.0
    %157 = vmatprep.subr.mxu0 0.0
    %158 = vmatpush1.msra.mxu0 0.0
    %159 = vmatprep.subr.mxu0 0.0
    %160 = vmatpush1.msra.mxu0 0.0
    %161 = vmatprep.subr.mxu0 0.0
    %162 = vmatpush1.msra.mxu0 0.0
    %163 = vmatprep.subr.mxu0 0.0
    %164 = vmatpush1.msra.mxu0 0.0
    %165 = vmatprep.subr.mxu0 0.0
    %166 = vmatpush1.msra.mxu0 0.0
    %167 = vmatprep.subr.mxu0 0.0
    %168 = vmatpush1.msra.mxu0 0.0
    %169 = vmatprep.subr.mxu0 0.0
    %170 = vmatpush1.msra.mxu0 0.0
    %171 = vmatprep.subr.mxu0 0.0
    %172 = vmatpush1.msra.mxu0 0.0
    %173 = vmatprep.subr.mxu0 0.0
    %174 = vmatpush1.msra.mxu0 0.0
    %175 = vmatprep.subr.mxu0 0.0
    %176 = vmatpush1.msra.mxu0 0.0
    %177 = vmatprep.subr.mxu0 0.0
    %178 = vmatpush1.msra.mxu0 0.0
    %179 = vmatprep.subr.mxu0 0.0
    %180 = vmatpush1.msra.mxu0 0.0
    %181 = vmatprep.subr.mxu0 0.0
    %182 = vmatpush1.msra.mxu0 0.0
    %183 = vmatprep.mubr.f32.mxu0 0.0
    %184 = vmatmul.mubr.f32.gmra.mrb[0].mxu0 %v117
    %v185 = vpop.f32.mrb[0].mxu0
    %v186 = vadd.f32 %v113, %v185
    %v187 = vpop.f32.mrb[0].mxu0
    %188 = vdwg.mxu0
    %v189 = vld [vmem:[%s4] sm:$0x1]
    %v191 = vlaneseq
    %v192 = vshrl.u32 %v191, 7
    %v193 = vsub.s32 0, %v192
    %v194 = vrot.slane %v189, %v193
    %v196 = vadd.f32 %v186, %v194
    %vm197 = vcmask 1043456
    %v198 = vsel %vm197, %v196, -inf
    %199 = vmax.xlane.f32.xlu0 %v198
    %v200 = vpop.xlane.xlu0 %199
    %v201 = vsub.f32 %v196, %v200
    %v202 = vmul.f32 %v201, 1.442695
    %v203 = vpow.pop %v202
    %v204 = vsel %vm197, %v203, 0.0
    %205 = vadd.xlane.f32.xlu0 %v204
    %v206 = vpop.xlane.xlu0 %205
    %v207 = vrcp.pop %v206
    %v208 = vmul.f32 %v203, %v207
    %v209 = vld [vmem:[%s5] sm:$0xff]
    %v210 = vld [vmem:[%s5 + $0x8] sm:$0xff]
    %v211 = vld [vmem:[%s5 + $0x10] sm:$0xff]
    %v212 = vld [vmem:[%s5 + $0x18] sm:$0xff]
    %v213 = vld [vmem:[%s5 + $0x20] sm:$0xff]
    %v214 = vld [vmem:[%s5 + $0x28] sm:$0xff]
    %v215 = vld [vmem:[%s5 + $0x30] sm:$0xff]
    %v216 = vld [vmem:[%s5 + $0x38] sm:$0xff]
    %v217 = vld [vmem:[%s5 + $0x40] sm:$0xff]
    %v218 = vld [vmem:[%s5 + $0x48] sm:$0xff]
    %v219 = vld [vmem:[%s5 + $0x50] sm:$0xff]
    %v220 = vld [vmem:[%s5 + $0x58] sm:$0xff]
    %v221 = vld [vmem:[%s5 + $0x60] sm:$0xff]
    %v222 = vld [vmem:[%s5 + $0x68] sm:$0xff]
    %v223 = vld [vmem:[%s5 + $0x70] sm:$0xff]
    %v224 = vld [vmem:[%s5 + $0x78] sm:$0xff]
    %225 = vmatprep.subr.mxu0 0.0
    %226 = vmatpush1.msra.mxu0 %v209
    %227 = vmatprep.subr.mxu0 0.0
    %228 = vmatpush1.msra.mxu0 %v210
    %229 = vmatprep.subr.mxu0 0.0
    %230 = vmatpush1.msra.mxu0 %v211
    %231 = vmatprep.subr.mxu0 0.0
    %232 = vmatpush1.msra.mxu0 %v212
    %233 = vmatprep.subr.mxu0 0.0
    %234 = vmatpush1.msra.mxu0 %v213
    %235 = vmatprep.subr.mxu0 0.0
    %236 = vmatpush1.msra.mxu0 %v214
    %237 = vmatprep.subr.mxu0 0.0
    %238 = vmatpush1.msra.mxu0 %v215
    %239 = vmatprep.subr.mxu0 0.0
    %240 = vmatpush1.msra.mxu0 %v216
    %241 = vmatprep.subr.mxu0 0.0
    %242 = vmatpush1.msra.mxu0 %v217
    %243 = vmatprep.subr.mxu0 0.0
    %244 = vmatpush1.msra.mxu0 %v218
    %245 = vmatprep.subr.mxu0 0.0
    %246 = vmatpush1.msra.mxu0 %v219
    %247 = vmatprep.subr.mxu0 0.0
    %248 = vmatpush1.msra.mxu0 %v220
    %249 = vmatprep.subr.mxu0 0.0
    %250 = vmatpush1.msra.mxu0 %v221
    %251 = vmatprep.subr.mxu0 0.0
    %252 = vmatpush1.msra.mxu0 %v222
    %253 = vmatprep.subr.mxu0 0.0
    %254 = vmatpush1.msra.mxu0 %v223
    %255 = vmatprep.subr.mxu0 0.0
    %256 = vmatpush1.msra.mxu0 %v224
    %257 = vmatprep.subr.mxu0 0.0
    %258 = vmatpush1.msra.mxu0 0.0
    %259 = vmatprep.subr.mxu0 0.0
    %260 = vmatpush1.msra.mxu0 0.0
    %261 = vmatprep.subr.mxu0 0.0
    %262 = vmatpush1.msra.mxu0 0.0
    %263 = vmatprep.subr.mxu0 0.0
    %264 = vmatpush1.msra.mxu0 0.0
    %265 = vmatprep.subr.mxu0 0.0
    %266 = vmatpush1.msra.mxu0 0.0
    %267 = vmatprep.subr.mxu0 0.0
    %268 = vmatpush1.msra.mxu0 0.0
    %269 = vmatprep.subr.mxu0 0.0
    %270 = vmatpush1.msra.mxu0 0.0
    %271 = vmatprep.subr.mxu0 0.0
    %272 = vmatpush1.msra.mxu0 0.0
    %273 = vmatprep.subr.mxu0 0.0
    %274 = vmatpush1.msra.mxu0 0.0
    %275 = vmatprep.subr.mxu0 0.0
    %276 = vmatpush1.msra.mxu0 0.0
    %277 = vmatprep.subr.mxu0 0.0
    %278 = vmatpush1.msra.mxu0 0.0
    %279 = vmatprep.subr.mxu0 0.0
    %280 = vmatpush1.msra.mxu0 0.0
    %281 = vmatprep.subr.mxu0 0.0
    %282 = vmatpush1.msra.mxu0 0.0
    %283 = vmatprep.subr.mxu0 0.0
    %284 = vmatpush1.msra.mxu0 0.0
    %285 = vmatprep.subr.mxu0 0.0
    %286 = vmatpush1.msra.mxu0 0.0
    %287 = vmatprep.subr.mxu0 0.0
    %288 = vmatpush1.msra.mxu0 0.0
    %289 = vmatprep.mubr.f32.mxu0 0.0
    %290 = vmatmul.mubr.f32.gmra.mrb[0].mxu0 %v208
    %v291 = vpop.f32.mrb[0].mxu0
    %v292 = vadd.f32 0.0, %v291
    %v293 = vpop.f32.mrb[0].mxu0
    %294 = vdwg.mxu0
    %vm295 = vcmask 519168
    %296 = vst.msk [vmem:[#allocation2] sm:$0xf] %vm295, %v292
    // Predicated region
    $region26: #{tpu_custom_call.1} parent=1 // pred_check
      _
    $region27: #{tpu_custom_call.1} parent=1 // pred_check_branch
      %298 = sbr.rel (0) target = $region29
    $region28: #{tpu_custom_call.1} parent=1 // pred_region
      %s300 = ssub.s32 64, 64
      %301 = vsyncadd [#allocation3], %s300
      %s303 = sshll.u32 [#allocation2], 4
      %s304 = int_to_ptr.vmem [resolvable:$true] %s303
      %306 = dma.vmem_to_hbm [thread:$0]  %s304, 64, %s6, [#allocation3]
    $region29: #{tpu_custom_call.1} parent=1 // pred_fallthru
      _
    // Predicated region
    $region30: #{tpu_custom_call.1} parent=1 // pred_check
      _
    $region31: #{tpu_custom_call.1} parent=1 // pred_check_branch
      %308 = sbr.rel (0) target = $region33
    $region32: #{tpu_custom_call.1} parent=1 // pred_region
      %309 = dma.done [#allocation3], 64
    $region33: #{tpu_custom_call.1} parent=1 // pred_fallthru
      _
    %310 = vsyncpa [#allocation3], 1

</llo_original>
